<compile_context>
chip_gen: v7x
topology: tpu7x:2x2x1
jax: 0.10.0
libtpu: 0.0.40
codegen_flags: <defaults>
</compile_context>

<pallas_src>
import functools
import math

import jax
import jax.numpy as jnp
from jax import lax
from jax.experimental import pallas as pl
from jax.experimental.pallas import tpu as pltpu


def _round_up(a, b):
    return -(-a // b) * b


def _ic_kernel(seed_ref, x_ref, affine_ref, o_ref, *,
               keep_threshold, block_elems, n_cols, apply_dropout):
    # Folded BatchNorm (and, in training, 1/keep_prob): one per-element FMA.
    x = x_ref[...]
    y = x * affine_ref[0:1, :] + affine_ref[1:2, :]

    if apply_dropout:
        # Counter-based hash PRNG (pure uint32 VPU ops -> lowers everywhere).
        # Seed is avalanched first so nearby seeds give unrelated masks.
        s = seed_ref[0].astype(jnp.uint32) * jnp.uint32(0x9E3779B9)
        s = s ^ (s >> 16)
        s = s * jnp.uint32(0x85EBCA6B)
        s = s ^ (s >> 13)

        base = (pl.program_id(0) * block_elems).astype(jnp.uint32)
        rows = lax.broadcasted_iota(jnp.int32, x.shape, 0).astype(jnp.uint32)
        cols = lax.broadcasted_iota(jnp.int32, x.shape, 1).astype(jnp.uint32)
        h = (base + rows * jnp.uint32(n_cols) + cols) ^ s
        h = h * jnp.uint32(0x9E3779B9)
        h = h ^ (h >> 16)
        h = h * jnp.uint32(0x7FEB352D)
        h = h ^ (h >> 15)
        h = h * jnp.uint32(0x846CA68B)
        h = h ^ (h >> 16)
        # Unsigned compare against round(keep_prob * 2^32): full 32-bit
        # resolution, no extra mask op.
        y = jnp.where(h < jnp.uint32(keep_threshold), y, 0.0)

    o_ref[...] = y.astype(o_ref.dtype)


def ic_layer_forward(x, params, *, p=0.0, training=False, seed=0,
                     eps=1e-5, row_block=None):
    """ICLayer forward: y = Dropout(p)(BatchNorm1d(C)(x)) for x of shape (N, C).

    Eval mode uses running stats and dropout is the identity; training mode
    uses batch statistics (biased variance) and applies inverted dropout.
    """
    N, C = x.shape

    gamma = params['gamma'].astype(jnp.float32)
    beta = params['beta'].astype(jnp.float32)
    if training:
        # Batch statistics in one fused pass over x (mean and E[x^2] together),
        # instead of jnp.mean + jnp.var's two dependent passes.
        xf = x.astype(jnp.float32)
        mean = jnp.mean(xf, axis=0)
        mean_sq = jnp.mean(xf * xf, axis=0)
        var = jnp.maximum(mean_sq - mean * mean, 0.0)
    else:
        mean = params['running_mean'].astype(jnp.float32)
        var = params['running_var'].astype(jnp.float32)

    # Fold BN into a single per-channel scale/shift.
    scale = gamma * lax.rsqrt(var + eps)
    shift = beta - mean * scale

    apply_dropout = bool(training) and float(p) > 0.0
    keep_prob = 1.0 - float(p)
    if apply_dropout:
        # Fold inverted-dropout 1/keep_prob into the affine: no extra VPU mul.
        scale = scale / keep_prob
        shift = shift / keep_prob
        keep_threshold = min(int(round(keep_prob * 4294967296.0)), 4294967295)
    else:
        keep_threshold = 0

    # Lane-dense view: make the last dim a multiple of 128 when possible so
    # stores are full-width vst rather than masked partial stores.
    if C % 128 == 0:
        M, L = N, C
    else:
        L = math.lcm(C, 128)
        if (N * C) % L == 0:
            M = (N * C) // L
        else:
            # TODO(synk): narrow C that does not reshape cleanly falls back to
            #             a sub-128-lane output (masked partial stores).
            M, L = N, C
    x_slab = x.reshape(M, L)
    reps = L // C
    affine = jnp.stack([jnp.tile(scale, reps), jnp.tile(shift, reps)])
    affine = affine.astype(x.dtype)        # bf16 inputs stay on the bf16 path

    # Row blocking: ~2 MiB of x per block, capped so there are >=4 grid steps
    # when possible (v7x megacore sharding + double-buffer overlap).
    itemsize = jnp.dtype(x.dtype).itemsize
    row_bytes = L * itemsize
    if row_block is None:
        if M <= 8:
            row_block = M
        else:
            vmem_rows = max(8, ((2 << 20) // row_bytes) // 8 * 8)
            step_rows = max(8, _round_up(-(-M // 4), 8))
            row_block = min(vmem_rows, step_rows)
    grid = -(-M // row_block)              # tail block masked; no pad / slice

    # Explicit scoped-VMEM budget: double-buffered in+out blocks plus
    # elementwise/hash temporaries, with headroom (above v5e's 16 MiB default,
    # under v7x's 64 MiB physical).
    block_bytes = row_block * L * itemsize
    temp_bytes = (6 if apply_dropout else 2) * row_block * L * 4
    vmem_limit = int(min(max(4 * block_bytes + temp_bytes + (2 << 20),
                             24 << 20), 48 << 20))

    seed_arr = jnp.asarray(seed, dtype=jnp.int32).reshape((1,))
    kernel = functools.partial(
        _ic_kernel, keep_threshold=keep_threshold,
        block_elems=row_block * L, n_cols=L, apply_dropout=apply_dropout)

    out_slab = pl.pallas_call(
        kernel,
        out_shape=jax.ShapeDtypeStruct((M, L), x.dtype),
        grid_spec=pltpu.PrefetchScalarGridSpec(
            num_scalar_prefetch=1,
            grid=(grid,),
            in_specs=[
                pl.BlockSpec((row_block, L), lambda i, *_: (i, 0)),
                pl.BlockSpec((2, L), lambda i, *_: (0, 0)),
            ],
            out_specs=pl.BlockSpec((row_block, L), lambda i, *_: (i, 0)),
        ),
        compiler_params=pltpu.CompilerParams(
            dimension_semantics=("parallel",),
            vmem_limit_bytes=vmem_limit),
    )(seed_arr, x_slab, affine)

    return out_slab.reshape(N, C)


if __name__ == "__main__":
    key = jax.random.PRNGKey(0)
    kx, kg, kb, km, kv, kx2 = jax.random.split(key, 6)

    eps = 1e-5
    p = 0.25

    # ---- case 1: lane-aligned channels (N=64, C=256) -------------------------
    N, C = 64, 256
    x = jax.random.normal(kx, (N, C), jnp.float32)
    params = {
        'gamma': jax.random.uniform(kg, (C,), jnp.float32, 0.5, 1.5),
        'beta': jax.random.uniform(kb, (C,), jnp.float32, -0.5, 0.5),
        'running_mean': 0.1 * jax.random.normal(km, (C,), jnp.float32),
        'running_var': jax.random.uniform(kv, (C,), jnp.float32, 0.5, 2.0),
    }

    # eval mode: running-stat BN, dropout = identity (deterministic).
    out_eval = jax.block_until_ready(
        ic_layer_forward(x, params, p=p, training=False))
    scale_ref = params['gamma'] / jnp.sqrt(params['running_var'] + eps)
    ref_eval = (x - params['running_mean']) * scale_ref + params['beta']
    assert out_eval.shape == (N, C), out_eval.shape
    assert jnp.allclose(out_eval, ref_eval, atol=1e-4, rtol=1e-4), \
        float(jnp.max(jnp.abs(out_eval - ref_eval)))

    # training mode: batch-stat BN + inverted dropout (structural check).
    out_train = jax.block_until_ready(
        ic_layer_forward(x, params, p=p, training=True, seed=123))
    mu = jnp.mean(x, axis=0)
    var = jnp.var(x, axis=0)
    bn_ref = (x - mu) * (params['gamma'] / jnp.sqrt(var + eps)) + params['beta']
    kept_ref = bn_ref / (1.0 - p)
    is_zero = jnp.abs(out_train) <= 1e-6
    is_kept = jnp.abs(out_train - kept_ref) <= 1e-4 + 1e-4 * jnp.abs(kept_ref)
    assert out_train.shape == (N, C), out_train.shape
    assert bool(jnp.all(is_zero | is_kept))
    drop_frac = float(jnp.mean(is_zero.astype(jnp.float32)))
    assert 0.10 < drop_frac < 0.40, drop_frac

    # different seeds must give different masks (seed decorrelation).
    out_train2 = jax.block_until_ready(
        ic_layer_forward(x, params, p=p, training=True, seed=124))
    assert bool(jnp.any((jnp.abs(out_train2) <= 1e-6) != is_zero))

    # ---- case 2: C not a multiple of 128 -> lane-dense slab path --------------
    N2, C2 = 48, 192
    x2 = jax.random.normal(kx2, (N2, C2), jnp.float32)
    params2 = {
        'gamma': jnp.linspace(0.5, 1.5, C2, dtype=jnp.float32),
        'beta': jnp.linspace(-0.2, 0.2, C2, dtype=jnp.float32),
        'running_mean': jnp.linspace(-0.1, 0.1, C2, dtype=jnp.float32),
        'running_var': jnp.linspace(0.5, 2.0, C2, dtype=jnp.float32),
    }
    out2 = jax.block_until_ready(
        ic_layer_forward(x2, params2, p=p, training=False))
    sc2 = params2['gamma'] / jnp.sqrt(params2['running_var'] + eps)
    ref2 = (x2 - params2['running_mean']) * sc2 + params2['beta']
    assert out2.shape == (N2, C2), out2.shape
    assert jnp.allclose(out2, ref2, atol=1e-4, rtol=1e-4), \
        float(jnp.max(jnp.abs(out2 - ref2)))

    print("KERNEL_OK")
</pallas_src>

<mosaic_0001>
module attributes {stable_mosaic.version = 11 : i64} {
  func.func @_ic_kernel(%arg0: i32, %arg1: memref<1xi32, #tpu.memory_space<smem>>, %arg2: memref<16x256xf32, #tpu.memory_space<vmem>>, %arg3: memref<2x256xf32, #tpu.memory_space<vmem>>, %arg4: memref<16x256xf32, #tpu.memory_space<vmem>>) attributes {dimension_semantics = [#tpu.dimension_semantics<parallel>], iteration_bounds = array<i64: 4>, scalar_prefetch = 1 : i64, scratch_operands = 0 : i64, tpu.core_type = #tpu.core_type<tc>, window_params = [{transform_indices = @transform_0, window_bounds = array<i64: 16, 256>}, {pipeline_mode = #tpu.pipeline_mode<synchronous>, transform_indices = @transform_1, window_bounds = array<i64: 2, 256>}, {transform_indices = @transform_2, window_bounds = array<i64: 16, 256>}]} {
    %c0 = arith.constant 0 : index
    %c0_0 = arith.constant 0 : index
    %0 = vector.load %arg2[%c0, %c0_0] : memref<16x256xf32, #tpu.memory_space<vmem>>, vector<16x256xf32>
    %c0_1 = arith.constant 0 : index
    %c0_2 = arith.constant 0 : index
    %1 = vector.load %arg3[%c0_1, %c0_2] : memref<2x256xf32, #tpu.memory_space<vmem>>, vector<1x256xf32>
    %2 = vector.broadcast %1 : vector<1x256xf32> to vector<16x256xf32>
    %3 = arith.mulf %0, %2 : vector<16x256xf32>
    %c1 = arith.constant 1 : index
    %c0_3 = arith.constant 0 : index
    %4 = vector.load %arg3[%c1, %c0_3] : memref<2x256xf32, #tpu.memory_space<vmem>>, vector<1x256xf32>
    %5 = vector.broadcast %4 : vector<1x256xf32> to vector<16x256xf32>
    %6 = arith.addf %3, %5 : vector<16x256xf32>
    %c0_4 = arith.constant 0 : index
    %c0_5 = arith.constant 0 : index
    %7 = vector.load %arg4[%c0_4, %c0_5] : memref<16x256xf32, #tpu.memory_space<vmem>>, vector<16x256xf32>
    tpu.vector_store %arg4[%c0_4, %c0_5], %6 {strides = array<i32>} : memref<16x256xf32, #tpu.memory_space<vmem>>, vector<16x256xf32>,
    return
  }
  func.func @transform_0(%arg0: i32, %arg1: memref<1xi32, #tpu.memory_space<smem>>) -> (i32, i32) {
    %c0_i32 = arith.constant 0 : i32
    %c0_i32_0 = arith.constant 0 : i32
    return %arg0, %c0_i32 : i32, i32
  }
  func.func @transform_1(%arg0: i32, %arg1: memref<1xi32, #tpu.memory_space<smem>>) -> (i32, i32) {
    %c0_i32 = arith.constant 0 : i32
    %c0_i32_0 = arith.constant 0 : i32
    %c0_i32_1 = arith.constant 0 : i32
    return %c0_i32, %c0_i32_0 : i32, i32
  }
  func.func @transform_2(%arg0: i32, %arg1: memref<1xi32, #tpu.memory_space<smem>>) -> (i32, i32) {
    %c0_i32 = arith.constant 0 : i32
    %c0_i32_0 = arith.constant 0 : i32
    return %arg0, %c0_i32 : i32, i32
  }
}

</mosaic_0001>

<llo_original>
// kernel: tpu_custom_call.1
$region0: #{tpu_custom_call.1}
  #allocation0 [shape = 'u32[]', space=smem, size = 0x4, offset = 0x4, fixed_abs, tag = 'smem constant byte address 0x4 - core index']
  #allocation1 [shape = 'u32[144,128]{1,0:T(1,128)}', space=vmem, size = 0x12000, scoped, tag = 'internal scratch']
  #allocation2 [shape = 's32[1]{0}', space=sflag, size = 0x4, scoped, tag = 'scoped memory for tpu_custom_call.1']
  #allocation3 [shape = 's32[1]{0:T(128)S(6)}', space=smem, size = 0x200, scoped, tag = 'prefetched SMEM operand 0']
  %s0 = inlined_call_operand.<no memory space> [shape: s32[1], index: 0, kind: input, shape index: {}]
  %s1 = inlined_call_operand.hbm [shape: f32[64,256], index: 1, kind: input, shape index: {}]
  %s2 = inlined_call_operand.vmem [shape: f32[2,256], index: 2, kind: input, shape index: {}]
  %s3 = inlined_call_operand.hbm [shape: f32[64,256], index: 3, kind: output, shape index: {}]
  %s4 = sld [smem:[#allocation0]]
  $region45: #{tpu_custom_call.1} parent=0
    _
  %s6 = ssub.s32 1, %s4
  %s7 = scalar_select 0, %s6, %s4
  %8 = sst [smem:[#allocation3]] %s0
  $region1: #{tpu_custom_call.1} parent=0
    #allocation4 [shape = 'u8[32768]{0}', space=vmem, size = 0x8000, scoped, tag = 'input window, operand 1']
    #allocation5 [shape = 's32[2]{0}', space=sflag, size = 0x8, scoped, tag = 'scoped memory for tpu_custom_call.1']
    #allocation6 [shape = 's32[2]{0}', space=sflag, size = 0x8, scoped, tag = 'scoped memory for tpu_custom_call.1']
    #allocation7 [shape = 'u8[32768]{0}', space=vmem, size = 0x8000, scoped, tag = 'output window, operand 0']
    %9 = vsyncpa [#allocation5], 0
    %s10 = scalar_lea.sflag [#allocation5], 1
    %11 = vsyncpa %s10, 0
    %12 = vsyncpa [#allocation6], 0
    %s13 = scalar_lea.sflag [#allocation6], 1
    %14 = vsyncpa %s13, 0
    loop: start=0, step=1, limit=6
    $region2: #{tpu_custom_call.1} parent=1 // loop_pre_header
      _
    $region3: #{tpu_custom_call.1} parent=1 // loop_header
      %s16 = sphi 0, %s20
      %p17 = scmp.ge.s32.totalorder %s16, 6
      %s26 = sphi 0, %s28
      %s29 = sphi 0, %s26
      %s30 = sphi 0, %s29
      %s46 = sphi 0, %s30
      %s50 = sphi 0, %s50
      %s52 = sphi 0, %s50
      %s53 = sphi 0, %s52
      %s67 = sphi 0, %s53
      %s73 = sphi 0, %s75
      %s76 = sphi 0, %s73
      %s77 = sphi 0, %s76
      %s93 = sphi 0, %s77
    $region4: #{tpu_custom_call.1} parent=1 // loop_header_branch
      %19 = sbr.rel (%p17) target = $region8
    $region5: #{tpu_custom_call.1} parent=1 // loop_body
      %s21 = ssub.s32 %s16, 1
      %s22 = ssub.s32 %s16, 2
      %s23 = sadd.s32 %s16, 1
      %s24 = ssub.s32 %s16, %s23
      %p25 = scmp.eq.s32.totalorder %s24, 0
      %s27 = sadd.s32 %s26, 1
      %s28 = scalar_select %p25, %s26, %s27
      %p31 = pneg %p25
      %p32 = scmp.eq.s32.totalorder %s16, 3
      %p33 = por %p31, %p32
      %p34 = scmp.ne.s32.totalorder %s26, %s29
      %p35 = scmp.eq.s32.totalorder %s16, 0
      %p36 = por %p34, %p35
      %p37 = scmp.ne.s32.totalorder %s26, %s29
      %p38 = scmp.eq.s32.totalorder %s21, 3
      %p39 = por %p37, %p38
      %p40 = scmp.ne.s32.totalorder %s29, %s30
      %p41 = scmp.eq.s32.totalorder %s21, 0
      %p42 = por %p40, %p41
      %p43 = scmp.ne.s32.totalorder %s29, %s30
      %p44 = scmp.eq.s32.totalorder %s22, 3
      %p45 = por %p43, %p44
      %p47 = scmp.ne.s32.totalorder %s30, %s46
      %p48 = scmp.eq.s32.totalorder %s22, 0
      %p49 = por %p47, %p48
      %s51 = sadd.s32 %s50, 1
      %p54 = scmp.eq.s32.totalorder %s16, 3
      %p55 = scmp.ne.s32.totalorder %s50, %s52
      %p56 = scmp.eq.s32.totalorder %s16, 0
      %p57 = por %p55, %p56
      %p58 = scmp.ne.s32.totalorder %s50, %s52
      %p59 = scmp.eq.s32.totalorder %s21, 3
      %p60 = por %p58, %p59
      %p61 = scmp.ne.s32.totalorder %s52, %s53
      %p62 = scmp.eq.s32.totalorder %s21, 0
      %p63 = por %p61, %p62
      %p64 = scmp.ne.s32.totalorder %s52, %s53
      %p65 = scmp.eq.s32.totalorder %s22, 3
      %p66 = por %p64, %p65
      %p68 = scmp.ne.s32.totalorder %s53, %s67
      %p69 = scmp.eq.s32.totalorder %s22, 0
      %p70 = por %p68, %p69
      %s71 = ssub.s32 %s16, %s23
      %p72 = scmp.eq.s32.totalorder %s71, 0
      %s74 = sadd.s32 %s73, 1
      %s75 = scalar_select %p72, %s73, %s74
      %p78 = pneg %p72
      %p79 = scmp.eq.s32.totalorder %s16, 3
      %p80 = por %p78, %p79
      %p81 = scmp.ne.s32.totalorder %s73, %s76
      %p82 = scmp.eq.s32.totalorder %s16, 0
      %p83 = por %p81, %p82
      %p84 = scmp.ne.s32.totalorder %s73, %s76
      %p85 = scmp.eq.s32.totalorder %s21, 3
      %p86 = por %p84, %p85
      %p87 = scmp.ne.s32.totalorder %s76, %s77
      %p88 = scmp.eq.s32.totalorder %s21, 0
      %p89 = por %p87, %p88
      %p90 = scmp.ne.s32.totalorder %s76, %s77
      %p91 = scmp.eq.s32.totalorder %s22, 3
      %p92 = por %p90, %p91
      %p94 = scmp.ne.s32.totalorder %s77, %s93
      %p95 = scmp.eq.s32.totalorder %s22, 0
      %p96 = por %p94, %p95
      %p97 = scmp.le.s32.totalorder 1, %s16
      %p98 = scmp.lt.s32.totalorder %s16, 5
      %p99 = pnand %p97, %p98
      %p100 = pneg %p99
      // Predicated region
      $region9: #{tpu_custom_call.1} parent=5 // pred_check
        _
      $region10: #{tpu_custom_call.1} parent=5 // pred_check_branch
        %102 = sbr.rel (%p99) target = $region12
      $region11: #{tpu_custom_call.1} parent=5 // pred_region
        %s103 = ssub.s32 %s16, 1
        // Predicated region
        $region13: #{tpu_custom_call.1} parent=11 // pred_check
          %p104 = pneg %p63
        $region14: #{tpu_custom_call.1} parent=11 // pred_check_branch
          %106 = sbr.rel (%p104) target = $region16
        $region15: #{tpu_custom_call.1} parent=11 // pred_region
          _
        $region16: #{tpu_custom_call.1} parent=11 // pred_fallthru
          _
      $region12: #{tpu_custom_call.1} parent=5 // pred_fallthru
        _
      %p107 = scmp.lt.s32.totalorder %s16, 4
      // Predicated region
      $region17: #{tpu_custom_call.1} parent=5 // pred_check
        %p108 = pneg %p107
      $region18: #{tpu_custom_call.1} parent=5 // pred_check_branch
        %110 = sbr.rel (%p108) target = $region20
      $region19: #{tpu_custom_call.1} parent=5 // pred_region
        // Predicated region
        $region21: #{tpu_custom_call.1} parent=19 // pred_check
          %p111 = pneg %p36
        $region22: #{tpu_custom_call.1} parent=19 // pred_check_branch
          %113 = sbr.rel (%p111) target = $region24
        $region23: #{tpu_custom_call.1} parent=19 // pred_region
          %s114 = sand.u32 %s26, 1
          %s115 = scalar_lea.sflag [#allocation5], %s114
          %s116 = sand.u32 %s26, 1
          %s117 = smul.addr %s116, 32
          %s118 = scalar_lea.vmem [#allocation4], %s117
          %s119 = smul.u32 2, %s16
          %s121 = ssub.s32 512, 512
          %122 = vsyncadd %s115, %s121
          %s123 = smul.addr %s119, 2
          %s124 = smul.addr %s123, 128
          %s125 = scalar_lea.hbm %s1, %s124
          %s126 = sshll.u32 %s118, 4
          %s127 = int_to_ptr.vmem [resolvable:$true] %s126
          %132 = dma.hbm_to_vmem [thread:$0]  %s125, 512, %s127, %s115, 256, 256, 16
        $region24: #{tpu_custom_call.1} parent=19 // pred_fallthru
          _
      $region20: #{tpu_custom_call.1} parent=5 // pred_fallthru
        _
      %p133 = scmp.le.s32.totalorder 1, %s16
      %p134 = scmp.lt.s32.totalorder %s16, 5
      %p135 = pnand %p133, %p134
      %p136 = pneg %p135
      // Predicated region
      $region25: #{tpu_custom_call.1} parent=5 // pred_check
        _
      $region26: #{tpu_custom_call.1} parent=5 // pred_check_branch
        %138 = sbr.rel (%p135) target = $region28
      $region27: #{tpu_custom_call.1} parent=5 // pred_region
        %s139 = ssub.s32 %s16, 1
        %s140 = sand.u32 %s29, 1
        %s141 = scalar_lea.sflag [#allocation5], %s140
        %s142 = sand.u32 %s29, 1
        %s143 = smul.addr %s142, 32
        %s144 = scalar_lea.vmem [#allocation4], %s143
        // Predicated region
        $region29: #{tpu_custom_call.1} parent=27 // pred_check
          %p145 = pneg %p42
        $region30: #{tpu_custom_call.1} parent=27 // pred_check_branch
          %147 = sbr.rel (%p145) target = $region32
        $region31: #{tpu_custom_call.1} parent=27 // pred_region
          %148 = dma.done %s141, 512
        $region32: #{tpu_custom_call.1} parent=27 // pred_fallthru
          _
        %s149 = sand.u32 %s29, 1
        %s150 = scalar_lea.sflag [#allocation5], %s149
        %s151 = sand.u32 %s29, 1
        %s152 = smul.addr %s151, 32
        %s153 = scalar_lea.vmem [#allocation4], %s152
        %p154 = pneg %p42
        %p155 = pneg %p39
        %p156 = pneg %p63
        %p157 = pneg %p60
        %p158 = pneg %p89
        %p159 = pneg %p86
        %s160 = sand.u32 %s76, 1
        %s161 = scalar_lea.sflag [#allocation6], %s160
        %s162 = sand.u32 %s76, 1
        %s163 = smul.addr %s162, 32
        %s164 = scalar_lea.vmem [#allocation7], %s163
        %s165 = smul.u32 2, %s21
        %s166 = smul.u32 2, %s21
        %v167 = vld [vmem:[%s144] sm:$0xff]
        %v168 = vld [vmem:[%s144 + $0x8] sm:$0xff]
        %v169 = vld [vmem:[%s144 + $0x10] sm:$0xff]
        %v170 = vld [vmem:[%s144 + $0x18] sm:$0xff]
        %v171 = vld [vmem:[%s2] ss:$2 sm:$0x3]
        %v173 = vlaneseq
        %v174 = vshrl.u32 %v173, 7
        %v175 = vsub.s32 0, %v174
        %v176 = vrot.slane %v171, %v175
        %v177 = vlaneseq
        %v178 = vshrl.u32 %v177, 7
        %v179 = vsub.s32 1, %v178
        %v180 = vrot.slane %v171, %v179
        %v183 = vmul.f32 %v167, %v176
        %v184 = vmul.f32 %v168, %v180
        %v185 = vmul.f32 %v169, %v176
        %v186 = vmul.f32 %v170, %v180
        %s187 = scalar_lea.vmem %s2, 1
        %v188 = vld [vmem:[%s187] ss:$2 sm:$0x3]
        %v190 = vlaneseq
        %v191 = vshrl.u32 %v190, 7
        %v192 = vsub.s32 0, %v191
        %v193 = vrot.slane %v188, %v192
        %v194 = vlaneseq
        %v195 = vshrl.u32 %v194, 7
        %v196 = vsub.s32 1, %v195
        %v197 = vrot.slane %v188, %v196
        %v200 = vadd.f32 %v183, %v193
        %v201 = vadd.f32 %v184, %v197
        %v202 = vadd.f32 %v185, %v193
        %v203 = vadd.f32 %v186, %v197
        %204 = vst [vmem:[%s164] sm:$0xff] %v200
        %205 = vst [vmem:[%s164 + $0x8] sm:$0xff] %v201
        %206 = vst [vmem:[%s164 + $0x10] sm:$0xff] %v202
        %207 = vst [vmem:[%s164 + $0x18] sm:$0xff] %v203
        %s208 = sand.u32 %s76, 1
        %s209 = scalar_lea.sflag [#allocation6], %s208
        %s210 = sand.u32 %s76, 1
        %s211 = smul.addr %s210, 32
        %s212 = scalar_lea.vmem [#allocation7], %s211
        // Predicated region
        $region33: #{tpu_custom_call.1} parent=27 // pred_check
          %p213 = pneg %p86
        $region34: #{tpu_custom_call.1} parent=27 // pred_check_branch
          %215 = sbr.rel (%p213) target = $region36
        $region35: #{tpu_custom_call.1} parent=27 // pred_region
          %s216 = smul.u32 2, %s21
          %s218 = ssub.s32 512, 512
          %219 = vsyncadd %s209, %s218
          %s220 = smul.addr %s216, 2
          %s221 = smul.addr %s220, 128
          %s222 = scalar_lea.hbm %s3, %s221
          %s223 = sshll.u32 %s212, 4
          %s224 = int_to_ptr.vmem [resolvable:$true] %s223
          %229 = dma.vmem_to_hbm [thread:$0]  %s224, 512, %s222, %s209, 256, 256, 16
        $region36: #{tpu_custom_call.1} parent=27 // pred_fallthru
          _
      $region28: #{tpu_custom_call.1} parent=5 // pred_fallthru
        _
      %p230 = scmp.le.s32.totalorder 2, %s16
      // Predicated region
      $region37: #{tpu_custom_call.1} parent=5 // pred_check
        %p231 = pneg %p230
      $region38: #{tpu_custom_call.1} parent=5 // pred_check_branch
        %233 = sbr.rel (%p231) target = $region40
      $region39: #{tpu_custom_call.1} parent=5 // pred_region
        %s234 = ssub.s32 %s16, 2
        // Predicated region
        $region41: #{tpu_custom_call.1} parent=39 // pred_check
          %p235 = pneg %p92
        $region42: #{tpu_custom_call.1} parent=39 // pred_check_branch
          %237 = sbr.rel (%p235) target = $region44
        $region43: #{tpu_custom_call.1} parent=39 // pred_region
          %s238 = sand.u32 %s77, 1
          %s239 = scalar_lea.sflag [#allocation6], %s238
          %s240 = sand.u32 %s77, 1
          %s241 = smul.addr %s240, 32
          %s242 = scalar_lea.vmem [#allocation7], %s241
          %243 = dma.done %s239, 512
        $region44: #{tpu_custom_call.1} parent=39 // pred_fallthru
          _
      $region40: #{tpu_custom_call.1} parent=5 // pred_fallthru
        _
    $region6: #{tpu_custom_call.1} parent=1 // loop_footer
      %s20 = sadd.s32 1, %s16
    $region7: #{tpu_custom_call.1} parent=1 // loop_footer_branch
      %15 = sbr.rel target = $region3
    $region8: #{tpu_custom_call.1} parent=1 // loop_exit
      _
    %244 = vsyncpa [#allocation5], 1
    %s245 = scalar_lea.sflag [#allocation5], 1
    %246 = vsyncpa %s245, 1
    %247 = vsyncpa [#allocation6], 1
    %s248 = scalar_lea.sflag [#allocation6], 1
    %249 = vsyncpa %s248, 1

</llo_original>
